<compile_context>
chip_gen: v5e
topology: v5e:2x2
jax: 0.10.0
libtpu: 0.0.40
codegen_flags: <defaults>
</compile_context>

<pallas_src>
import jax
import jax.numpy as jnp
from jax.experimental import pallas as pl
from jax.experimental.pallas import tpu as pltpu

IN_FEATURES = 10
OUT_FEATURES = 5

# Batch size at/below which we use the gridless single-block path (pure
# launch-overhead regime; nothing in-kernel is measurable there).
_GRIDLESS_MAX_BATCH = 1024


def _round_up(n, m):
    return ((n + m - 1) // m) * m


def _device_tuning():
    """Generation-specific (batch_tile, vmem_limit_bytes).

    The transposed layout costs ~192 bytes of double-buffered VMEM per batch
    row, so these tiles sit well under each generation's budget while keeping
    per-grid-step DMA in the multi-microsecond range.
    """
    kind = ""
    try:
        kind = jax.devices()[0].device_kind.lower()
    except Exception:
        pass
    if "v7" in kind:
        # v7x: 64 MiB VMEM per TensorCore -> leave headroom (~48 MiB budget).
        return 128 * 1024, 48 * 1024 * 1024
    if "v5" in kind or "v6" in kind:
        # v5e/v6e: 128 MiB physical VMEM (scoped default is only 16/32 MiB).
        return 192 * 1024, 96 * 1024 * 1024
    # Unknown generation: conservative settings that fit everywhere.
    return 32 * 1024, 32 * 1024 * 1024


def linear_t_kernel(xt_ref, w_ref, b_ref, ot_ref):
    """y^T = W @ x^T + b with batch on the lane axis.

    xt_ref: (IN, tb)   w_ref: (OUT, IN)   b_ref: (OUT, 1)   ot_ref: (OUT, tb)
    """
    yt = jnp.dot(w_ref[...], xt_ref[...], preferred_element_type=jnp.float32)
    ot_ref[...] = (yt + b_ref[...]).astype(ot_ref.dtype)


@jax.jit
def simple_net_forward(x, weight, bias):
    """nn.Linear(10, 5) forward: x @ weight.T + bias (weight in (OUT, IN) layout)."""
    B = x.shape[0]
    xt = x.T                                 # (IN, B): batch on the lane axis
    b2d = bias.reshape(OUT_FEATURES, 1)      # (OUT, 1) broadcasts over lanes
    out_t_shape = jax.ShapeDtypeStruct((OUT_FEATURES, B), x.dtype)

    if B <= _GRIDLESS_MAX_BATCH:
        # Gridless single-block call: no software-pipeline prologue/epilogue.
        # Runtime here is pure custom-call overhead.
        # TODO(synk): if this small-batch path is hot in production, fuse the
        # linear into the surrounding/consumer Pallas kernel instead.
        yt = pl.pallas_call(
            linear_t_kernel,
            out_shape=out_t_shape,
            in_specs=[
                pl.BlockSpec(memory_space=pltpu.MemorySpace.VMEM),
                pl.BlockSpec(memory_space=pltpu.MemorySpace.VMEM),
                pl.BlockSpec(memory_space=pltpu.MemorySpace.VMEM),
            ],
            out_specs=pl.BlockSpec(memory_space=pltpu.MemorySpace.VMEM),
        )(xt, weight, b2d)
        return yt.T

    # Scaling path: tile only the (lane-axis) batch dimension.  Weight / bias
    # use constant index_maps so they stay VMEM-resident across grid steps.
    # Default double-buffering only; VMEM is spent on larger tiles instead.
    batch_tile, vmem_limit = _device_tuning()
    # Lane-axis tiles must be a multiple of 128; cap at ceil(B/2) so the grid
    # has >= 2 steps and v7x's two TensorCores both get work.
    tb = min(batch_tile, _round_up(pl.cdiv(B, 2), 128))
    grid = (pl.cdiv(B, tb),)

    yt = pl.pallas_call(
        linear_t_kernel,
        out_shape=out_t_shape,
        grid_spec=pltpu.PrefetchScalarGridSpec(
            num_scalar_prefetch=0,
            grid=grid,
            in_specs=[
                pl.BlockSpec((IN_FEATURES, tb), lambda i: (0, i)),
                pl.BlockSpec((OUT_FEATURES, IN_FEATURES), lambda i: (0, 0)),
                pl.BlockSpec((OUT_FEATURES, 1), lambda i: (0, 0)),
            ],
            out_specs=pl.BlockSpec((OUT_FEATURES, tb), lambda i: (0, i)),
        ),
        compiler_params=pltpu.CompilerParams(
            dimension_semantics=("parallel",),
            vmem_limit_bytes=vmem_limit,
        ),
    )(xt, weight, b2d)
    return yt.T


if __name__ == "__main__":
    key = jax.random.PRNGKey(0)
    kx, kw, kb, kx2 = jax.random.split(key, 4)

    # Deterministic parameters (mimics nn.Linear's uniform(-1/sqrt(in), +1/sqrt(in))).
    bound = 1.0 / (IN_FEATURES ** 0.5)
    weight = jax.random.uniform(
        kw, (OUT_FEATURES, IN_FEATURES), dtype=jnp.float32,
        minval=-bound, maxval=bound)
    bias = jax.random.uniform(
        kb, (OUT_FEATURES,), dtype=jnp.float32, minval=-bound, maxval=bound)

    # Small-batch (gridless) path — the module's nominal usage.
    B = 2
    x = jax.random.normal(kx, (B, IN_FEATURES), dtype=jnp.float32)
    out = jax.block_until_ready(simple_net_forward(x, weight, bias))
    ref = x @ weight.T + bias
    assert out.shape == (B, OUT_FEATURES)
    assert jnp.allclose(out, ref, atol=1e-5, rtol=1e-5)

    # Tiled (scaling) path, including a partial final batch tile (B % tb != 0)
    # to confirm block clamping discards the padded rows correctly.
    B2 = 4000
    x2 = jax.random.normal(kx2, (B2, IN_FEATURES), dtype=jnp.float32)
    out2 = jax.block_until_ready(simple_net_forward(x2, weight, bias))
    ref2 = x2 @ weight.T + bias
    assert out2.shape == (B2, OUT_FEATURES)
    assert jnp.allclose(out2, ref2, atol=1e-5, rtol=1e-5)

    print("KERNEL_OK")
</pallas_src>

<mosaic_0001>
module attributes {stable_mosaic.version = 11 : i64} {
  func.func @linear_t_kernel(%arg0: memref<10x2xf32, #tpu.memory_space<vmem>>, %arg1: memref<5x10xf32, #tpu.memory_space<vmem>>, %arg2: memref<5x1xf32, #tpu.memory_space<vmem>>, %arg3: memref<5x2xf32, #tpu.memory_space<vmem>>) attributes {dimension_semantics = [], scalar_prefetch = 0 : i64, scratch_operands = 0 : i64, tpu.core_type = #tpu.core_type<tc>} {
    %c0 = arith.constant 0 : index
    %c0_0 = arith.constant 0 : index
    %0 = vector.load %arg1[%c0, %c0_0] : memref<5x10xf32, #tpu.memory_space<vmem>>, vector<5x10xf32>
    %c0_1 = arith.constant 0 : index
    %c0_2 = arith.constant 0 : index
    %1 = vector.load %arg0[%c0_1, %c0_2] : memref<10x2xf32, #tpu.memory_space<vmem>>, vector<10x2xf32>
    %cst = arith.constant dense<0.000000e+00> : vector<5x2xf32>
    %2 = tpu.matmul %0, %1, %cst {dimension_numbers = #tpu.dot_dimension_numbers<[1], [0], [0], [1], [0, 0, 1, 1], [], []>} : vector<5x10xf32>, vector<10x2xf32>, vector<5x2xf32> -> vector<5x2xf32>
    %c0_3 = arith.constant 0 : index
    %c0_4 = arith.constant 0 : index
    %3 = vector.load %arg2[%c0_3, %c0_4] : memref<5x1xf32, #tpu.memory_space<vmem>>, vector<5x1xf32>
    %4 = vector.broadcast %3 : vector<5x1xf32> to vector<5x2xf32>
    %5 = arith.addf %2, %4 : vector<5x2xf32>
    %c0_5 = arith.constant 0 : index
    %c0_6 = arith.constant 0 : index
    %6 = vector.load %arg3[%c0_5, %c0_6] : memref<5x2xf32, #tpu.memory_space<vmem>>, vector<5x2xf32>
    tpu.vector_store %arg3[%c0_5, %c0_6], %5 {strides = array<i32>} : memref<5x2xf32, #tpu.memory_space<vmem>>, vector<5x2xf32>,
    return
  }
}

</mosaic_0001>

<llo_original>
// kernel: simple_net_forward.1
$region0: #{simple_net_forward.1}
  #allocation0 [shape = 'u32[]', space=smem, size = 0x4, offset = 0x4, fixed_abs, tag = 'smem constant byte address 0x4 - core index']
  #allocation1 [shape = 'u32[72,128]{1,0:T(1,128)}', space=vmem, size = 0x9000, scoped, tag = 'internal scratch']
  %s0 = inlined_call_operand.vmem [shape: f32[10,2], index: 0, kind: input, shape index: {}]
  %s1 = inlined_call_operand.vmem [shape: f32[5,10], index: 1, kind: input, shape index: {}]
  %s2 = inlined_call_operand.vmem [shape: f32[5,1], index: 2, kind: input, shape index: {}]
  %s3 = inlined_call_operand.vmem [shape: f32[5,2], index: 3, kind: output, shape index: {}]
  %s4 = sld [smem:[#allocation0]]
  $region22: #{simple_net_forward.1} parent=0
    _
  %s6 = ssub.s32 1, %s4
  %s7 = scalar_select 0, %s6, %s4
  // Predicated region
  $region2: #{simple_net_forward.1} parent=0 // pred_check
    _
  $region3: #{simple_net_forward.1} parent=0 // pred_check_branch
    %9 = sbr.rel (0) target = $region5
  $region4: #{simple_net_forward.1} parent=0 // pred_region
    _
  $region5: #{simple_net_forward.1} parent=0 // pred_fallthru
    _
  // Predicated region
  $region6: #{simple_net_forward.1} parent=0 // pred_check
    _
  $region7: #{simple_net_forward.1} parent=0 // pred_check_branch
    %11 = sbr.rel (0) target = $region9
  $region8: #{simple_net_forward.1} parent=0 // pred_region
    _
  $region9: #{simple_net_forward.1} parent=0 // pred_fallthru
    _
  // Predicated region
  $region10: #{simple_net_forward.1} parent=0 // pred_check
    _
  $region11: #{simple_net_forward.1} parent=0 // pred_check_branch
    %13 = sbr.rel (0) target = $region13
  $region12: #{simple_net_forward.1} parent=0 // pred_region
    _
  $region13: #{simple_net_forward.1} parent=0 // pred_fallthru
    _
  %v14 = vld [vmem:[%s1] sm:$0x1f]
  %v15 = vld [vmem:[%s0] sm:$0xff]
  %v16 = vld [vmem:[%s0 + $0x8] sm:$0x3]
  %v17 = vld [vmem:[%s2] sm:$0x1f]
  %19 = vset.pattern.permute.xlu0 0
  %20 = vperm.xlu0 %19, %v17
  %v21 = vpop.permute.xlu0 %20
  %vm23 = vcmask 80896
  %v25 = vsel %vm23, %v14, 0
  %vm27 = vcmask 1041408
  %v29 = vsel %vm27, %v16, 0
  %31 = vmatpush.msra.mxu0 0.0
  %32 = vmatpush.msra.mxu0 0.0
  %33 = vmatpush.msra.mxu0 0.0
  %34 = vmatpush.msra.mxu0 0.0
  %35 = vmatpush.msra.mxu0 0.0
  %36 = vmatpush.msra.mxu0 0.0
  %37 = vmatpush.msra.mxu0 0.0
  %38 = vmatpush.msra.mxu0 0.0
  %39 = vmatpush.msra.mxu0 0.0
  %40 = vmatpush.msra.mxu0 0.0
  %41 = vmatpush.msra.mxu0 0.0
  %42 = vmatpush.msra.mxu0 0.0
  %43 = vmatpush.msra.mxu0 0.0
  %44 = vmatpush.msra.mxu0 0.0
  %45 = vmatpush.msra.mxu0 %v29
  %46 = vmatpush.msra.mxu0 %v15
  %47 = vmatmul.f32.gmra.mxu0 %v25
  %v48 = vpop.f32.mrf.mxu0
  %v49 = vadd.f32 %v21, %v48
  %50 = vdwg.mxu0
  %vm51 = vcmask 12288
  %52 = vst.msk [vmem:[%s3] sm:$0x1f] %vm51, %v49
  // Predicated region
  $region14: #{simple_net_forward.1} parent=0 // pred_check
    _
  $region15: #{simple_net_forward.1} parent=0 // pred_check_branch
    %54 = sbr.rel (0) target = $region17
  $region16: #{simple_net_forward.1} parent=0 // pred_region
    _
  $region17: #{simple_net_forward.1} parent=0 // pred_fallthru
    _
  // Predicated region
  $region18: #{simple_net_forward.1} parent=0 // pred_check
    _
  $region19: #{simple_net_forward.1} parent=0 // pred_check_branch
    %56 = sbr.rel (0) target = $region21
  $region20: #{simple_net_forward.1} parent=0 // pred_region
    _
  $region21: #{simple_net_forward.1} parent=0 // pred_fallthru
    _

</llo_original>
